<compile_context>
chip_gen: v6e
topology: v6e:2x2x1
jax: 0.10.0
libtpu: 0.0.40
codegen_flags: <defaults>
</compile_context>

<pallas_src>
import functools

import jax
import jax.numpy as jnp
from jax import lax
from jax.experimental import pallas as pl
from jax.experimental.pallas import tpu as pltpu


def _round_up(x, m):
    return ((x + m - 1) // m) * m


def _pick_tile(dim, max_tile, multiple):
    """Largest tile <= max_tile that divides `dim` and is a multiple of
    `multiple`; falls back to the full dim (always a valid block shape)."""
    if dim <= max_tile:
        return dim
    t = (max_tile // multiple) * multiple
    while t >= multiple:
        if dim % t == 0:
            return t
        t -= multiple
    return dim


def _is_megacore():
    """True iff the chip has 2 TensorCores (v7x), where a single-block grid
    would leave one core idle."""
    try:
        return "v7" in jax.devices()[0].device_kind.lower()
    except Exception:  # defensive: default to no split
        return False


def _linear_acc_kernel(x_ref, w_ref, o_ref):
    """One (tm, tn) tile of y = x @ w.T, accumulated over the K grid axis.

    x_ref: (tm, tk) tile of x
    w_ref: (tn, tk) tile of w (native PyTorch (out, in) layout, NOT transposed)
    o_ref: (tm, tn) f32 output tile, VMEM-resident across the K axis
    """
    @pl.when(pl.program_id(2) == 0)
    def _():
        o_ref[...] = jnp.zeros_like(o_ref)

    # Contract x's last dim against w's last dim == x @ w.T on the MXU,
    # accumulating in f32.
    o_ref[...] += lax.dot_general(
        x_ref[...],
        w_ref[...],
        dimension_numbers=(((1,), (1,)), ((), ())),
        preferred_element_type=jnp.float32,
    )


def _linear_single_kernel(x_ref, w_ref, o_ref):
    """K grid extent == 1: direct store (no zero-init / read-modify-write)."""
    o_ref[...] = lax.dot_general(
        x_ref[...],
        w_ref[...],
        dimension_numbers=(((1,), (1,)), ((), ())),
        preferred_element_type=jnp.float32,
    )


@functools.partial(
    jax.jit,
    static_argnames=("b_pad", "n_pad", "tm", "tn", "tk", "use_bf16"),
)
def _forward_padded(x, w, *, b_pad, n_pad, tm, tn, tk, use_bf16):
    B, N = x.shape
    in_dtype = jnp.bfloat16 if use_bf16 else jnp.float32
    in_bytes = jnp.dtype(in_dtype).itemsize

    xp = x.astype(in_dtype)
    wp = w.astype(in_dtype)
    if b_pad != B or n_pad != N:
        # Zero padding is exact for x @ w.T; padded rows/cols are sliced off.
        xp = jnp.pad(xp, ((0, b_pad - B), (0, n_pad - N)))
        wp = jnp.pad(wp, ((0, n_pad - N), (0, n_pad - N)))

    grid = (b_pad // tm, n_pad // tn, n_pad // tk)  # i (batch), j (out-N), k
    kernel = _linear_single_kernel if grid[2] == 1 else _linear_acc_kernel

    # W streamed B/tm times, x streamed N/tn times, y written once.
    cost = pl.CostEstimate(
        flops=2 * b_pad * n_pad * n_pad,
        transcendentals=0,
        bytes_accessed=(
            n_pad * n_pad * in_bytes * grid[0]
            + b_pad * n_pad * in_bytes * grid[1]
            + b_pad * n_pad * 4
        ),
    )

    # Double-buffered input tiles + f32 output tile; set the scoped limit
    # explicitly so v5e's 16 MiB default never rejects grown tiles.
    vmem_need = 2 * (tm * tk * in_bytes + tn * tk * in_bytes + tm * tn * 4)
    vmem_limit = int(min(max(2 * vmem_need, 16 << 20), 48 << 20))

    y = pl.pallas_call(
        kernel,
        out_shape=jax.ShapeDtypeStruct((b_pad, n_pad), jnp.float32),
        grid_spec=pltpu.PrefetchScalarGridSpec(
            num_scalar_prefetch=0,
            grid=grid,
            in_specs=[
                # x tile: rows i, contraction slice k.
                pl.BlockSpec((tm, tk), lambda i, j, k: (i, k)),
                # w tile in native (out, in) layout: out-rows j, in-cols k.
                pl.BlockSpec((tn, tk), lambda i, j, k: (j, k)),
            ],
            out_specs=pl.BlockSpec((tm, tn), lambda i, j, k: (i, j)),
        ),
        compiler_params=pltpu.CompilerParams(
            dimension_semantics=("parallel", "parallel", "arbitrary"),
            vmem_limit_bytes=vmem_limit,
        ),
        cost_estimate=cost,
    )(xp, wp)

    if b_pad != B or n_pad != N:
        y = y[:B, :N]
    return y


def simple_sample_convnet_forward(x, w, *, tm=None, tn=None, tk=None,
                                  use_bf16=True):
    """Forward pass of SimpleSampleConvNet: y = x @ w.T (no bias).

    x: (B, N);  w: (N, N) in PyTorch Linear (out_features, in_features) layout.
    `use_bf16=True` casts inputs to bf16 (f32 accumulation, f32 output); set
    False for strict-f32 numerics.
    """
    B, N = x.shape
    assert w.shape == (N, N), "weight must be (N, N) matching nn.Linear(N, N)"

    # Pad for lane-dense output (N -> mult of 128) and sublane-aligned rows.
    b_pad = _round_up(B, 8)
    n_pad = _round_up(N, 128)

    sub = 16 if use_bf16 else 8  # bf16 sublane tile is 16
    tn_user = tn is not None
    if tm is None:
        tm = _pick_tile(b_pad, 1024 if b_pad >= 1024 else 512, sub)
    if tn is None:
        tn = _pick_tile(n_pad, 1024 if n_pad >= 1024 else 512, 128)
    if tk is None:
        tk = _pick_tile(n_pad, 1024 if n_pad >= 1024 else 512, 128)

    # v7x megacore: if the grid collapses to a single block, split the out-N
    # ("parallel") axis so both TensorCores stream disjoint halves of W.
    if (not tn_user and _is_megacore()
            and b_pad // tm == 1 and n_pad // tn == 1 and n_pad // tk == 1
            and n_pad % 256 == 0):
        tn = n_pad // 2

    assert b_pad % tm == 0 and n_pad % tn == 0 and n_pad % tk == 0

    return _forward_padded(x, w, b_pad=b_pad, n_pad=n_pad, tm=tm, tn=tn,
                           tk=tk, use_bf16=use_bf16)


if __name__ == "__main__":
    key = jax.random.PRNGKey(0)

    def run_case(B, N, use_bf16=True, **tiles):
        kx, kw = jax.random.split(jax.random.fold_in(key, B * 100003 + N))
        x = jax.random.normal(kx, (B, N), dtype=jnp.float32)
        # Deterministic init matching nn.Linear's (out_features, in_features).
        w = jax.random.uniform(
            kw, (N, N), dtype=jnp.float32, minval=-1.0, maxval=1.0
        ) / jnp.sqrt(N)
        y = simple_sample_convnet_forward(x, w, use_bf16=use_bf16, **tiles)
        y = jax.block_until_ready(y)
        y_ref = x @ w.T
        assert y.shape == (B, N)
        tol = 3e-2 if use_bf16 else 1e-4
        assert jnp.allclose(y, y_ref, atol=tol, rtol=tol), (
            f"mismatch vs reference for B={B}, N={N}, bf16={use_bf16}"
        )

    # Toy size implied by the module (N = PUBLIC_GRADS[0].shape[0] *
    # PUBLIC_GRADS[0].shape[1] = 8 * 16 = 128): single block, bf16 path.
    run_case(8, 128)

    # Strict-f32 path (no bf16 cast), tight tolerance.
    run_case(8, 128, use_bf16=False)

    # Multi-block case: exercises the K-accumulation kernel and gives both
    # parallel axes extent >= 2.
    run_case(16, 512, tm=8, tn=256, tk=256)

    # Non-128-multiple N: exercises the lane-density padding path.
    run_case(4, 200)

    print("KERNEL_OK")
</pallas_src>

<mosaic_0001>
module attributes {stable_mosaic.version = 11 : i64} {
  func.func @_linear_single_kernel(%arg0: i32, %arg1: i32, %arg2: i32, %arg3: memref<8x128xbf16, #tpu.memory_space<vmem>>, %arg4: memref<128x128xbf16, #tpu.memory_space<vmem>>, %arg5: memref<8x128xf32, #tpu.memory_space<vmem>>) attributes {dimension_semantics = [#tpu.dimension_semantics<parallel>, #tpu.dimension_semantics<parallel>, #tpu.dimension_semantics<arbitrary>], iteration_bounds = array<i64: 1, 1, 1>, scalar_prefetch = 0 : i64, scratch_operands = 0 : i64, tpu.core_type = #tpu.core_type<tc>, window_params = [{transform_indices = @transform_0, window_bounds = array<i64: 8, 128>}, {transform_indices = @transform_1, window_bounds = array<i64: 128, 128>}, {transform_indices = @transform_2, window_bounds = array<i64: 8, 128>}]} {
    %c0 = arith.constant 0 : index
    %c0_0 = arith.constant 0 : index
    %0 = vector.load %arg3[%c0, %c0_0] : memref<8x128xbf16, #tpu.memory_space<vmem>>, vector<8x128xbf16>
    %c0_1 = arith.constant 0 : index
    %c0_2 = arith.constant 0 : index
    %1 = vector.load %arg4[%c0_1, %c0_2] : memref<128x128xbf16, #tpu.memory_space<vmem>>, vector<128x128xbf16>
    %cst = arith.constant dense<0.000000e+00> : vector<8x128xf32>
    %2 = tpu.matmul %0, %1, %cst {dimension_numbers = #tpu.dot_dimension_numbers<[1], [1], [0], [0], [0, 0, 1, 0], [], []>} : vector<8x128xbf16>, vector<128x128xbf16>, vector<8x128xf32> -> vector<8x128xf32>
    %c0_3 = arith.constant 0 : index
    %c0_4 = arith.constant 0 : index
    %3 = vector.load %arg5[%c0_3, %c0_4] : memref<8x128xf32, #tpu.memory_space<vmem>>, vector<8x128xf32>
    tpu.vector_store %arg5[%c0_3, %c0_4], %2 {strides = array<i32>} : memref<8x128xf32, #tpu.memory_space<vmem>>, vector<8x128xf32>,
    return
  }
  func.func @transform_0(%arg0: i32, %arg1: i32, %arg2: i32) -> (i32, i32) {
    %c0_i32 = arith.constant 0 : i32
    return %arg0, %arg2 : i32, i32
  }
  func.func @transform_1(%arg0: i32, %arg1: i32, %arg2: i32) -> (i32, i32) {
    %c0_i32 = arith.constant 0 : i32
    return %arg1, %arg2 : i32, i32
  }
  func.func @transform_2(%arg0: i32, %arg1: i32, %arg2: i32) -> (i32, i32) {
    %c0_i32 = arith.constant 0 : i32
    return %arg0, %arg1 : i32, i32
  }
}

</mosaic_0001>

<llo_original>
// kernel: _forward_padded.1
$region0: #{_forward_padded.1}
  #allocation0 [shape = 'u32[]', space=smem, size = 0x4, offset = 0x4, fixed_abs, tag = 'smem constant byte address 0x4 - core index']
  #allocation1 [shape = 'u32[144,128]{1,0:T(1,128)}', space=vmem, size = 0x12000, scoped, tag = 'internal scratch']
  %s0 = inlined_call_operand.vmem [shape: bf16[8,128], index: 0, kind: input, shape index: {}]
  %s1 = inlined_call_operand.vmem [shape: bf16[128,128], index: 1, kind: input, shape index: {}]
  %s2 = inlined_call_operand.hbm [shape: f32[8,128], index: 2, kind: output, shape index: {}]
  %s3 = sld [smem:[#allocation0]]
  $region18: #{_forward_padded.1} parent=0
    _
  %s5 = ssub.s32 1, %s3
  %s6 = scalar_select 0, %s5, %s3
  $region1: #{_forward_padded.1} parent=0
    #allocation2 [shape = 'u8[4096]{0}', space=vmem, size = 0x1000, scoped, tag = 'output window, operand 0, single buffered']
    #allocation3 [shape = 's32[1]{0}', space=sflag, size = 0x4, scoped, tag = 'scoped memory for _forward_padded.1']
    %7 = vsyncpa [#allocation3], 0
    // Predicated region
    $region2: #{_forward_padded.1} parent=1 // pred_check
      _
    $region3: #{_forward_padded.1} parent=1 // pred_check_branch
      %9 = sbr.rel (0) target = $region5
    $region4: #{_forward_padded.1} parent=1 // pred_region
      _
    $region5: #{_forward_padded.1} parent=1 // pred_fallthru
      _
    // Predicated region
    $region6: #{_forward_padded.1} parent=1 // pred_check
      _
    $region7: #{_forward_padded.1} parent=1 // pred_check_branch
      %11 = sbr.rel (0) target = $region9
    $region8: #{_forward_padded.1} parent=1 // pred_region
      _
    $region9: #{_forward_padded.1} parent=1 // pred_fallthru
      _
    %v13 = vld [vmem:[%s0] sm:$0xf]
    %v14 = vld [vmem:[%s1] sm:$0xf]
    %v15 = vld [vmem:[%s1 + $0x4] sm:$0xf]
    %v16 = vld [vmem:[%s1 + $0x8] sm:$0xf]
    %v17 = vld [vmem:[%s1 + $0xc] sm:$0xf]
    %v18 = vld [vmem:[%s1 + $0x10] sm:$0xf]
    %v19 = vld [vmem:[%s1 + $0x14] sm:$0xf]
    %v20 = vld [vmem:[%s1 + $0x18] sm:$0xf]
    %v21 = vld [vmem:[%s1 + $0x1c] sm:$0xf]
    %v22 = vld [vmem:[%s1 + $0x20] sm:$0xf]
    %v23 = vld [vmem:[%s1 + $0x24] sm:$0xf]
    %v24 = vld [vmem:[%s1 + $0x28] sm:$0xf]
    %v25 = vld [vmem:[%s1 + $0x2c] sm:$0xf]
    %v26 = vld [vmem:[%s1 + $0x30] sm:$0xf]
    %v27 = vld [vmem:[%s1 + $0x34] sm:$0xf]
    %v28 = vld [vmem:[%s1 + $0x38] sm:$0xf]
    %v29 = vld [vmem:[%s1 + $0x3c] sm:$0xf]
    %v46 = vunpack.c.l.b16 %v14
    %v47 = vunpack.c.l.b16 %v15
    %v48 = vunpack.c.l.b16 %v16
    %v49 = vunpack.c.l.b16 %v17
    %v50 = vunpack.c.l.b16 %v18
    %v51 = vunpack.c.l.b16 %v19
    %v52 = vunpack.c.l.b16 %v20
    %v53 = vunpack.c.l.b16 %v21
    %v54 = vunpack.c.l.b16 %v22
    %v55 = vunpack.c.l.b16 %v23
    %v56 = vunpack.c.l.b16 %v24
    %v57 = vunpack.c.l.b16 %v25
    %v58 = vunpack.c.l.b16 %v26
    %v59 = vunpack.c.l.b16 %v27
    %v60 = vunpack.c.l.b16 %v28
    %v61 = vunpack.c.l.b16 %v29
    %v62 = vpack.c.b16 %v47, %v46
    %v63 = vpack.c.b16 %v49, %v48
    %v64 = vpack.c.b16 %v51, %v50
    %v65 = vpack.c.b16 %v53, %v52
    %v66 = vpack.c.b16 %v55, %v54
    %v67 = vpack.c.b16 %v57, %v56
    %v68 = vpack.c.b16 %v59, %v58
    %v69 = vpack.c.b16 %v61, %v60
    %78 = vmatprep.subr.bf16.mxu0 0
    %79 = vmatpush1.bf16.xpose.msra.mxu0 %v69
    %80 = vmatprep.subr.bf16.mxu0 0
    %81 = vmatpush1.bf16.xpose.msra.mxu0 %v68
    %82 = vmatprep.subr.bf16.mxu0 0
    %83 = vmatpush1.bf16.xpose.msra.mxu0 %v67
    %84 = vmatprep.subr.bf16.mxu0 0
    %85 = vmatpush1.bf16.xpose.msra.mxu0 %v66
    %86 = vmatprep.subr.bf16.mxu0 0
    %87 = vmatpush1.bf16.xpose.msra.mxu0 %v65
    %88 = vmatprep.subr.bf16.mxu0 0
    %89 = vmatpush1.bf16.xpose.msra.mxu0 %v64
    %90 = vmatprep.subr.bf16.mxu0 0
    %91 = vmatpush1.bf16.xpose.msra.mxu0 %v63
    %92 = vmatprep.subr.bf16.mxu0 0
    %93 = vmatpush1.bf16.xpose.msra.mxu0 %v62
    %94 = vmatprep.subr.bf16.mxu0 0
    %95 = vmatpush2.bf16.xpose.msra.mxu0 0
    %96 = vmatprep.subr.bf16.mxu0 0
    %97 = vmatpush2.bf16.xpose.msra.mxu0 0
    %98 = vmatprep.subr.bf16.mxu0 0
    %99 = vmatpush2.bf16.xpose.msra.mxu0 0
    %100 = vmatprep.subr.bf16.mxu0 0
    %101 = vmatpush2.bf16.xpose.msra.mxu0 0
    %102 = vmatprep.subr.bf16.mxu0 0
    %103 = vmatpush2.bf16.xpose.msra.mxu0 0
    %104 = vmatprep.subr.bf16.mxu0 0
    %105 = vmatpush2.bf16.xpose.msra.mxu0 0
    %106 = vmatprep.subr.bf16.mxu0 0
    %107 = vmatpush2.bf16.xpose.msra.mxu0 0
    %108 = vmatprep.subr.bf16.mxu0 0
    %109 = vmatpush2.bf16.xpose.msra.mxu0 0
    %110 = vmatprep.mubr.bf16.mxu0 0
    %111 = vmatmul.mubr.bf16.gmra.mxu0 %v13
    %v112 = vpop.f32.mrf.mxu0
    %v113 = vadd.f32 0.0, %v112
    %v114 = vpop.f32.mrf.mxu0
    %v115 = vpop.f32.mrf.mxu0
    %v116 = vpop.f32.mrf.mxu0
    %117 = vdwg.mxu0
    %118 = vst [vmem:[#allocation2] sm:$0xff] %v113
    // Predicated region
    $region10: #{_forward_padded.1} parent=1 // pred_check
      _
    $region11: #{_forward_padded.1} parent=1 // pred_check_branch
      %120 = sbr.rel (0) target = $region13
    $region12: #{_forward_padded.1} parent=1 // pred_region
      %s122 = ssub.s32 128, 128
      %123 = vsyncadd [#allocation3], %s122
      %s125 = sshll.u32 [#allocation2], 4
      %s126 = int_to_ptr.vmem [resolvable:$true] %s125
      %128 = dma.vmem_to_hbm [thread:$0]  %s126, 128, %s2, [#allocation3]
    $region13: #{_forward_padded.1} parent=1 // pred_fallthru
      _
    // Predicated region
    $region14: #{_forward_padded.1} parent=1 // pred_check
      _
    $region15: #{_forward_padded.1} parent=1 // pred_check_branch
      %130 = sbr.rel (0) target = $region17
    $region16: #{_forward_padded.1} parent=1 // pred_region
      %131 = dma.done [#allocation3], 128
    $region17: #{_forward_padded.1} parent=1 // pred_fallthru
      _
    %132 = vsyncpa [#allocation3], 1

</llo_original>
